<compile_context>
chip_gen: v7x
topology: tpu7x:2x2x1
jax: 0.10.0
libtpu: 0.0.40
codegen_flags: <defaults>
</compile_context>

<pallas_src>
import functools
import math

import jax
import jax.numpy as jnp
from jax import lax
from jax.experimental import pallas as pl
from jax.experimental.pallas import tpu as pltpu


_MIN_SPLIT_BYTES = 2 << 20        # split rows into >=2 blocks once total >= 2x this (megacore balance)
_MAX_SEG_MATRIX_BYTES = 2 << 20   # cap on the in-kernel segmented-sum selector (packed path)


def _round_up(x: int, m: int) -> int:
    return ((x + m - 1) // m) * m


def _sublane_multiple(dtype) -> int:
    # Sub-32-bit dtypes pack along sublanes: f32 -> 8, bf16 -> 16, int8/fp8 -> 32.
    return max(8, 32 // jnp.dtype(dtype).itemsize)


def _device_budgets():
    """Generation-aware (per-buffer block budget, small-input fallback bytes, VMEM capacity)."""
    vmem_cap = 64 << 20                          # conservative default (v7x class)
    try:
        cap = getattr(pltpu.get_tpu_info(), "vmem_capacity_bytes", None)
        if cap:
            vmem_cap = int(cap)
    except Exception:
        pass
    if vmem_cap <= (64 << 20):                   # v7x: 64 MiB VMEM, ~3.2 TB/s HBM
        return 8 << 20, 4 << 20, vmem_cap
    return 16 << 20, 2 << 20, vmem_cap           # v5e / v6e: 128 MiB VMEM


def _vmem_limit(block_bytes: int, vmem_cap: int) -> int:
    ceiling = (3 * vmem_cap) // 4
    want = max(32 << 20, 4 * block_bytes + (4 << 20))
    return int(min(ceiling, want))


def _choose_row_tile(rows: int, row_bytes: int, sub: int, budget: int) -> int:
    """Row tile: sublane-aligned, bounded by the byte budget, balanced (even #blocks)."""
    total = rows * row_bytes
    cap = max(sub, (budget // max(row_bytes, 1)) // sub * sub)   # hard byte cap in rows
    nb = pl.cdiv(rows, cap) if cap < rows else 1
    if nb > 1 or total >= 2 * _MIN_SPLIT_BYTES:
        nb = max(nb, 2)
        if nb % 2:
            nb += 1                               # even #row-blocks -> balanced across 2 TCs (v7x)
    tr = pl.cdiv(rows, nb)
    tr = min(_round_up(tr, sub), cap, rows)
    return rows if tr >= rows else tr             # full extent always satisfies layout rules


def _pool_kernel(z_ref, o_ref, acc_ref, *, inv_hw, hw, thw, need_mask):
    """(tr, thw) block -> per-row partial f32 sums accumulated over the hw grid axis."""
    j = pl.program_id(1)

    @pl.when(j == 0)
    def _init():
        acc_ref[...] = jnp.zeros_like(acc_ref)

    z = z_ref[...].astype(jnp.float32)
    if need_mask:
        col = j * thw + lax.broadcasted_iota(jnp.int32, z.shape, 1)
        z = jnp.where(col < hw, z, 0.0)
    acc_ref[...] += jnp.sum(z, axis=-1, keepdims=True)

    @pl.when(j == pl.num_programs(1) - 1)
    def _finalize():
        o_ref[...] = (acc_ref[...] * inv_hw).astype(o_ref.dtype)


def _packed_pool_kernel(z_ref, o_ref, *, inv_hw, hw, g):
    """Lane-packed block (tr, g*hw): g original rows folded onto the lane axis.

    The per-segment (per original row) sum is one MXU matmul against a
    block-diagonal ones selector -> (tr, g); hidden under the HBM-bound DMA.
    """
    z = z_ref[...].astype(jnp.float32)                          # (tr, g*hw)
    hwp = g * hw
    seg = (lax.broadcasted_iota(jnp.int32, (hwp, g), 0) // hw
           == lax.broadcasted_iota(jnp.int32, (hwp, g), 1)).astype(jnp.float32)
    sums = jnp.dot(z, seg, preferred_element_type=jnp.float32)  # (tr, g)
    o_ref[...] = (sums * inv_hw).astype(o_ref.dtype)


def base_model_flatten(z: jax.Array, *, force_pallas: bool = False,
                       block_budget_bytes: int | None = None) -> jax.Array:
    """Pallas equivalent of BaseModel.flatten: (N, C, H, W) -> (N, C)."""
    n, c, h, w = z.shape
    dtype = z.dtype
    itemsize = jnp.dtype(dtype).itemsize
    rows, hw = n * c, h * w

    budget, small_bytes, vmem_cap = _device_budgets()
    if block_budget_bytes is not None:
        budget = int(block_budget_bytes)

    # Tiny inputs: XLA's fused reduce is already near roofline; a Pallas launch
    # is pure overhead there (threshold is generation-aware).
    if not force_pallas and z.size * itemsize <= small_bytes:
        return jnp.mean(z.astype(jnp.float32), axis=(2, 3)).astype(dtype)

    sub = _sublane_multiple(dtype)
    inv_hw = 1.0 / float(hw)
    z2 = z.reshape(rows, hw)                      # free, contiguous view of NCHW

    # ---- Packed path: ragged / narrow H*W -> fold g rows onto the 128-lane axis ----
    g = 128 // math.gcd(hw, 128)
    hwp = g * hw                                  # multiple of 128 by construction
    if (hw % 128 != 0 and g > 1 and rows % g == 0
            and hwp * itemsize * sub <= budget
            and hwp * g * 4 <= _MAX_SEG_MATRIX_BYTES):
        rows_p = rows // g
        row_bytes_p = hwp * itemsize
        tr = _choose_row_tile(rows_p, row_bytes_p, sub, budget)
        block_bytes = tr * row_bytes_p
        out = pl.pallas_call(
            functools.partial(_packed_pool_kernel, inv_hw=inv_hw, hw=hw, g=g),
            out_shape=jax.ShapeDtypeStruct((rows_p, g), dtype),
            grid=(pl.cdiv(rows_p, tr),),
            in_specs=[pl.BlockSpec((tr, hwp), lambda i: (i, 0))],
            out_specs=pl.BlockSpec((tr, g), lambda i: (i, 0)),
            compiler_params=pltpu.CompilerParams(
                dimension_semantics=("parallel",),
                vmem_limit_bytes=_vmem_limit(block_bytes + 2 * hwp * g * 4, vmem_cap),
            ),
        )(z2.reshape(rows_p, hwp))
        return out.reshape(n, c)

    # ---- Generic path: rows axis "parallel", hw axis tiled ("arbitrary") only when needed ----
    row_bytes = hw * itemsize
    if row_bytes * sub > budget:
        # Even the minimal sublane-aligned block with full hw would blow the VMEM
        # budget -> tile the reduction (hw) axis too.
        tr = rows if rows <= 64 else 64           # 64 is a multiple of every sublane count
        thw = max(128, (budget // (tr * itemsize)) // 128 * 128)
        thw = min(thw, hw)
    else:
        tr = _choose_row_tile(rows, row_bytes, sub, budget)
        thw = hw
    n_hw = pl.cdiv(hw, thw)
    need_mask = (hw % thw) != 0
    block_bytes = tr * thw * itemsize

    out = pl.pallas_call(
        functools.partial(_pool_kernel, inv_hw=inv_hw, hw=hw, thw=thw,
                          need_mask=need_mask),
        out_shape=jax.ShapeDtypeStruct((rows, 1), dtype),
        grid=(pl.cdiv(rows, tr), n_hw),
        in_specs=[pl.BlockSpec((tr, thw), lambda i, j: (i, j))],
        out_specs=pl.BlockSpec((tr, 1), lambda i, j: (i, 0)),
        scratch_shapes=[pltpu.VMEM((tr, 1), jnp.float32)],
        compiler_params=pltpu.CompilerParams(
            dimension_semantics=("parallel", "arbitrary"),
            vmem_limit_bytes=_vmem_limit(block_bytes, vmem_cap),
        ),
    )(z2)
    return out.reshape(n, c)


class BaseModelPallas:
    """JAX/Pallas port of BaseModel.  No trainable parameters in __init__."""

    def __init__(self, name: str, context_size: int = 5, pred_horizon=5,
                 learn_angle: bool = True, in_channels: int = 1,
                 goal_condition: bool = False,
                 target_context_enable: bool = True) -> None:
        self.name = name
        self.context_size = context_size
        self.learn_angle = learn_angle
        self.pred_horizon = pred_horizon
        self.goal_condition = goal_condition
        self.target_context_enable = target_context_enable
        self.action_dim = 4 if self.learn_angle else 2
        self.in_channels = in_channels

    def flatten(self, z: jax.Array) -> jax.Array:
        return base_model_flatten(z)

    def count_parameters(self):
        # No parameters are declared in BaseModel.__init__.
        total_params = 0
        print(f"Total Trainable Params: {total_params / 1e6:.2f}M")
        return total_params


if __name__ == "__main__":
    key = jax.random.PRNGKey(0)
    k1, k2, k3, k4, k5 = jax.random.split(key, 5)

    model = BaseModelPallas(name="base", in_channels=4)

    # 1. Canonical small shape (2, 4, 16, 16): auto path (fallback) + forced Pallas path.
    z1 = jax.random.normal(k1, (2, 4, 16, 16), dtype=jnp.float32)
    ref1 = jnp.mean(z1, axis=(2, 3))
    o_auto = jax.block_until_ready(model.flatten(z1))
    o_pal = jax.block_until_ready(base_model_flatten(z1, force_pallas=True))
    assert o_auto.shape == (2, 4) and o_pal.shape == (2, 4)
    assert jnp.allclose(o_auto, ref1, atol=1e-5, rtol=1e-5)
    assert jnp.allclose(o_pal, ref1, atol=1e-5, rtol=1e-5)

    # 2. Larger lane-dense case: single hw block, one big row block.
    z2 = jax.random.normal(k2, (8, 256, 16, 16), dtype=jnp.float32)
    o2 = jax.block_until_ready(base_model_flatten(z2, force_pallas=True))
    assert jnp.allclose(o2, jnp.mean(z2, axis=(2, 3)), atol=1e-5, rtol=1e-5)

    # 3. bf16 + small block budget: multi-step parallel row grid, sublane multiple of 16.
    z3 = jax.random.normal(k3, (4, 512, 16, 16), dtype=jnp.float32).astype(jnp.bfloat16)
    o3 = jax.block_until_ready(
        base_model_flatten(z3, force_pallas=True, block_budget_bytes=256 * 1024))
    ref3 = jnp.mean(z3.astype(jnp.float32), axis=(2, 3))
    assert o3.shape == (4, 512)
    assert jnp.allclose(o3.astype(jnp.float32), ref3, atol=1e-2, rtol=1e-2)

    # 4. Huge-row regime (forced via a tiny budget): hw-axis reduction grid + column masking.
    z4 = jax.random.normal(k4, (2, 8, 66, 64), dtype=jnp.float32)
    o4 = jax.block_until_ready(
        base_model_flatten(z4, force_pallas=True, block_budget_bytes=64 * 1024))
    assert jnp.allclose(o4, jnp.mean(z4, axis=(2, 3)), atol=1e-5, rtol=1e-5)

    # 5. Ragged narrow H*W (6x6): lane-packed path with MXU segmented sum.
    z5 = jax.random.normal(k5, (2, 64, 6, 6), dtype=jnp.float32)
    o5 = jax.block_until_ready(base_model_flatten(z5, force_pallas=True))
    assert jnp.allclose(o5, jnp.mean(z5, axis=(2, 3)), atol=1e-5, rtol=1e-5)

    print("KERNEL_OK")
</pallas_src>

<mosaic_0001>
module attributes {stable_mosaic.version = 11 : i64} {
  func.func @_pool_kernel(%arg0: i32, %arg1: i32, %arg2: memref<8x256xf32, #tpu.memory_space<vmem>>, %arg3: memref<8x1xf32, #tpu.memory_space<vmem>>, %arg4: memref<8x1xf32, #tpu.memory_space<vmem>>) attributes {dimension_semantics = [#tpu.dimension_semantics<parallel>, #tpu.dimension_semantics<arbitrary>], iteration_bounds = array<i64: 1, 1>, scalar_prefetch = 0 : i64, scratch_operands = 1 : i64, tpu.core_type = #tpu.core_type<tc>, window_params = [{transform_indices = @transform_0, window_bounds = array<i64: 8, 256>}, {transform_indices = @transform_1, window_bounds = array<i64: 8, 1>}]} {
    %c0_i32 = arith.constant 0 : i32
    %0 = arith.cmpi eq, %arg1, %c0_i32 : i32
    %1 = arith.extui %0 : i1 to i32
    %c0_i32_0 = arith.constant 0 : i32
    %2 = arith.cmpi ne, %1, %c0_i32_0 : i32
    scf.if %2 {
      %cst_8 = arith.constant 0.000000e+00 : f32
      %12 = vector.broadcast %cst_8 : f32 to vector<8x1xf32>
      %c0_9 = arith.constant 0 : index
      %c0_10 = arith.constant 0 : index
      %13 = vector.load %arg4[%c0_9, %c0_10] : memref<8x1xf32, #tpu.memory_space<vmem>>, vector<8x1xf32>
      tpu.vector_store %arg4[%c0_9, %c0_10], %12 {strides = array<i32>} : memref<8x1xf32, #tpu.memory_space<vmem>>, vector<8x1xf32>,
    } else {
    }
    %c0 = arith.constant 0 : index
    %c0_1 = arith.constant 0 : index
    %3 = vector.load %arg2[%c0, %c0_1] : memref<8x256xf32, #tpu.memory_space<vmem>>, vector<8x256xf32>
    %c0_2 = arith.constant 0 : index
    %c0_3 = arith.constant 0 : index
    %4 = vector.load %arg4[%c0_2, %c0_3] : memref<8x1xf32, #tpu.memory_space<vmem>>, vector<8x1xf32>
    %cst = arith.constant dense<0.000000e+00> : vector<8xf32>
    %5 = vector.multi_reduction <add>, %3, %cst [1] : vector<8x256xf32> to vector<8xf32>
    %6 = vector.shape_cast %5 : vector<8xf32> to vector<8x1xf32>
    %7 = arith.addf %4, %6 : vector<8x1xf32>
    %c0_4 = arith.constant 0 : index
    %c0_5 = arith.constant 0 : index
    %8 = vector.load %arg4[%c0_4, %c0_5] : memref<8x1xf32, #tpu.memory_space<vmem>>, vector<8x1xf32>
    tpu.vector_store %arg4[%c0_4, %c0_5], %7 {strides = array<i32>} : memref<8x1xf32, #tpu.memory_space<vmem>>, vector<8x1xf32>,
    %c0_i32_6 = arith.constant 0 : i32
    %9 = arith.cmpi eq, %arg1, %c0_i32_6 : i32
    %10 = arith.extui %9 : i1 to i32
    %c0_i32_7 = arith.constant 0 : i32
    %11 = arith.cmpi ne, %10, %c0_i32_7 : i32
    scf.if %11 {
      %c0_8 = arith.constant 0 : index
      %c0_9 = arith.constant 0 : index
      %12 = vector.load %arg4[%c0_8, %c0_9] : memref<8x1xf32, #tpu.memory_space<vmem>>, vector<8x1xf32>
      %cst_10 = arith.constant 3.906250e-03 : f32
      %13 = vector.broadcast %cst_10 : f32 to vector<8x1xf32>
      %14 = arith.mulf %12, %13 : vector<8x1xf32>
      %c0_11 = arith.constant 0 : index
      %c0_12 = arith.constant 0 : index
      %15 = vector.load %arg3[%c0_11, %c0_12] : memref<8x1xf32, #tpu.memory_space<vmem>>, vector<8x1xf32>
      tpu.vector_store %arg3[%c0_11, %c0_12], %14 {strides = array<i32>} : memref<8x1xf32, #tpu.memory_space<vmem>>, vector<8x1xf32>,
    } else {
    }
    return
  }
  func.func @transform_0(%arg0: i32, %arg1: i32) -> (i32, i32) {
    %c0_i32 = arith.constant 0 : i32
    return %arg0, %arg1 : i32, i32
  }
  func.func @transform_1(%arg0: i32, %arg1: i32) -> (i32, i32) {
    %c0_i32 = arith.constant 0 : i32
    %c0_i32_0 = arith.constant 0 : i32
    return %arg0, %c0_i32 : i32, i32
  }
}

</mosaic_0001>

<llo_original>
// kernel: tpu_custom_call.1
$region0: #{tpu_custom_call.1}
  #allocation0 [shape = 'u32[]', space=smem, size = 0x4, offset = 0x4, fixed_abs, tag = 'smem constant byte address 0x4 - core index']
  #allocation1 [shape = 'u32[144,128]{1,0:T(1,128)}', space=vmem, size = 0x12000, scoped, tag = 'internal scratch']
  #allocation2 [shape = 'f32[8,1]{1,0:T(8,128)}', space=vmem, size = 0x1000, scoped, tag = 'scratch operand']
  %s0 = inlined_call_operand.hbm [shape: f32[8,256], index: 0, kind: input, shape index: {}]
  %s1 = inlined_call_operand.vmem [shape: f32[8,1], index: 1, kind: output, shape index: {}]
  %s2 = sld [smem:[#allocation0]]
  $region26: #{tpu_custom_call.1} parent=0
    _
  %s4 = ssub.s32 1, %s2
  %s5 = scalar_select 0, %s4, %s2
  $region1: #{tpu_custom_call.1} parent=0
    #allocation3 [shape = 'u8[8192]{0}', space=vmem, size = 0x2000, scoped, tag = 'input window, operand 0, single buffered']
    #allocation4 [shape = 's32[1]{0}', space=sflag, size = 0x4, scoped, tag = 'scoped memory for tpu_custom_call.1']
    %6 = vsyncpa [#allocation4], 0
    // Predicated region
    $region2: #{tpu_custom_call.1} parent=1 // pred_check
      _
    $region3: #{tpu_custom_call.1} parent=1 // pred_check_branch
      %8 = sbr.rel (0) target = $region5
    $region4: #{tpu_custom_call.1} parent=1 // pred_region
      %s10 = ssub.s32 256, 256
      %11 = vsyncadd [#allocation4], %s10
      %s13 = sshll.u32 [#allocation3], 4
      %s14 = int_to_ptr.vmem [resolvable:$true] %s13
      %16 = dma.hbm_to_vmem [thread:$0]  %s0, 256, %s14, [#allocation4]
    $region5: #{tpu_custom_call.1} parent=1 // pred_fallthru
      _
    // Predicated region
    $region6: #{tpu_custom_call.1} parent=1 // pred_check
      _
    $region7: #{tpu_custom_call.1} parent=1 // pred_check_branch
      %18 = sbr.rel (0) target = $region9
    $region8: #{tpu_custom_call.1} parent=1 // pred_region
      %19 = dma.done [#allocation4], 256
    $region9: #{tpu_custom_call.1} parent=1 // pred_fallthru
      _
    %p20 = scmp.eq.s32.totalorder 0, 0
    // Predicated region
    $region10: #{tpu_custom_call.1} parent=1 // pred_check
      %p21 = pneg %p20
    $region11: #{tpu_custom_call.1} parent=1 // pred_check_branch
      %23 = sbr.rel (%p21) target = $region13
    $region12: #{tpu_custom_call.1} parent=1 // pred_region
      %vm24 = vcmask 7168
      %25 = vst.msk [vmem:[#allocation2] sm:$0xff] %vm24, 0.0
    $region13: #{tpu_custom_call.1} parent=1 // pred_fallthru
      _
    %v26 = vld [vmem:[#allocation3] sm:$0xff]
    %v27 = vld [vmem:[#allocation3 + $0x8] sm:$0xff]
    %v28 = vld [vmem:[#allocation2] sm:$0xff]
    %v29 = vadd.f32 %v26, %v27
    %30 = vadd.xlane.f32.xlu0 %v29
    %v31 = vpop.xlane.xlu0 %30
    %v32 = vadd.f32 %v28, %v31
    %vm33 = vcmask 7168
    %34 = vst.msk [vmem:[#allocation2] sm:$0xff] %vm33, %v32
    // Predicated region
    $region14: #{tpu_custom_call.1} parent=1 // pred_check
      %p35 = pneg %p20
    $region15: #{tpu_custom_call.1} parent=1 // pred_check_branch
      %37 = sbr.rel (%p35) target = $region17
    $region16: #{tpu_custom_call.1} parent=1 // pred_region
      %v38 = vld [vmem:[#allocation2] sm:$0xff]
      %v39 = vmul.f32 %v38, 0.00390625
      %40 = vst.msk [vmem:[%s1] sm:$0xff] %vm33, %v39
    $region17: #{tpu_custom_call.1} parent=1 // pred_fallthru
      _
    // Predicated region
    $region18: #{tpu_custom_call.1} parent=1 // pred_check
      _
    $region19: #{tpu_custom_call.1} parent=1 // pred_check_branch
      %42 = sbr.rel (0) target = $region21
    $region20: #{tpu_custom_call.1} parent=1 // pred_region
      _
    $region21: #{tpu_custom_call.1} parent=1 // pred_fallthru
      _
    // Predicated region
    $region22: #{tpu_custom_call.1} parent=1 // pred_check
      _
    $region23: #{tpu_custom_call.1} parent=1 // pred_check_branch
      %44 = sbr.rel (0) target = $region25
    $region24: #{tpu_custom_call.1} parent=1 // pred_region
      _
    $region25: #{tpu_custom_call.1} parent=1 // pred_fallthru
      _
    %45 = vsyncpa [#allocation4], 1

</llo_original>
